<compile_context>
chip_gen: v7x
topology: tpu7x:2x2x1
jax: 0.10.0
libtpu: 0.0.40
codegen_flags: <defaults>
</compile_context>

<pallas_src>
import jax
import jax.numpy as jnp
from jax.experimental import pallas as pl
from jax.experimental.pallas import tpu as pltpu


_LANES = 128                    # lane-dense last dim -> full, unmasked stores
_TARGET_BLOCK_BYTES = 2 << 20   # ~2 MiB per block; 4 buffers total = 8 MiB VMEM


def _copy_kernel(x_ref, o_ref):
    # Identity copy: view() never changes values, only shape metadata.
    o_ref[...] = x_ref[...]


def _pallas_identity_copy(flat2d):
    """Tiled, double-buffered identity copy of a (rows, 128) lane-dense slab."""
    rows, lanes = flat2d.shape
    itemsize = flat2d.dtype.itemsize
    block_rows = max(8, _TARGET_BLOCK_BYTES // (lanes * itemsize))
    if block_rows >= rows:
        block_rows = rows              # full extent: no (8,128) requirement
    else:
        block_rows -= block_rows % 8   # keep blocks sublane-aligned
    grid = (pl.cdiv(rows, block_rows),)
    return pl.pallas_call(
        _copy_kernel,
        out_shape=jax.ShapeDtypeStruct(flat2d.shape, flat2d.dtype),
        grid=grid,
        in_specs=[pl.BlockSpec((block_rows, lanes), lambda i: (i, 0))],
        out_specs=pl.BlockSpec((block_rows, lanes), lambda i: (i, 0)),
        # view() is metadata-only: reuse the input HBM buffer for the output.
        input_output_aliases={0: 0},
        compiler_params=pltpu.CompilerParams(
            dimension_semantics=("parallel",)),   # shards blocks over v7x's 2 TCs
    )(flat2d)


class View:
    """JAX/Pallas equivalent of the PyTorch `View` module."""

    def __init__(self, size):
        self.size = tuple(int(s) for s in size)

    def _resolve_size(self, n):
        """Resolve a single -1 and validate, mirroring torch.Tensor.view."""
        size = list(self.size)
        neg = [i for i, s in enumerate(size) if s == -1]
        if len(neg) > 1:
            raise ValueError("only one dimension can be inferred (-1)")
        if neg:
            known = 1
            for i, s in enumerate(size):
                if i != neg[0]:
                    known *= s
            if known <= 0 or n % known != 0:
                raise ValueError(
                    f"shape {self.size} is invalid for input of size {n}")
            size[neg[0]] = n // known
        else:
            prod = 1
            for s in size:
                prod *= s
            if prod != n:
                raise ValueError(
                    f"shape {self.size} is invalid for input of size {n}")
        return tuple(size)

    def __call__(self, tensor):
        n = tensor.size
        size = self._resolve_size(n)

        # Row-major (C-order) flatten == PyTorch contiguous memory order.
        flat = jnp.reshape(tensor, (-1,))

        n_main = (n // _LANES) * _LANES
        if n_main == 0:
            # Fewer than 128 elements: nothing worth tiling; identity in JAX.
            # TODO(synk): could use a tiny masked Pallas store instead.
            out_flat = flat
        elif n_main == n:
            main2d = jnp.reshape(flat, (n // _LANES, _LANES))
            out_flat = jnp.reshape(_pallas_identity_copy(main2d), (-1,))
        else:
            # 128-aligned prefix through the tiled kernel; the <128-element
            # tail is a pure identity handled in plain JAX.
            main2d = jnp.reshape(flat[:n_main], (n_main // _LANES, _LANES))
            out_main = jnp.reshape(_pallas_identity_copy(main2d), (-1,))
            out_flat = jnp.concatenate([out_main, flat[n_main:]])

        # Zero-cost metadata reshape to the requested view size (glue).
        return jnp.reshape(out_flat, size)


if __name__ == "__main__":
    key = jax.random.PRNGKey(0)
    k0, k1, k2 = jax.random.split(key, 3)

    # 1) Primary check: small NCHW-like input, common flatten pattern.
    x = jax.random.normal(k0, (2, 4, 16, 16), dtype=jnp.float32)
    y = View((2, -1))(x)
    y = jax.block_until_ready(y)
    ref = jnp.reshape(x, (2, 1024))
    assert y.shape == (2, 1024), y.shape
    assert y.dtype == x.dtype
    assert bool(jnp.array_equal(y, ref))

    # 2) Multi-block grid path with a partial last block
    #    (rows = 4104 > block_rows = 4096 -> grid=(2,), 8-row tail block).
    x2 = jax.random.normal(k1, (2, 4104, 64), dtype=jnp.float32)
    y2 = View((-1, 64))(x2)
    y2 = jax.block_until_ready(y2)
    assert y2.shape == (8208, 64), y2.shape
    assert bool(jnp.array_equal(y2, jnp.reshape(x2, (8208, 64))))

    # 3) Non-multiple-of-128 size: 128-aligned prefix via kernel + plain-JAX tail.
    x3 = jax.random.normal(k2, (2, 131), dtype=jnp.float32)
    y3 = View((131, 2))(x3)
    y3 = jax.block_until_ready(y3)
    assert y3.shape == (131, 2), y3.shape
    assert bool(jnp.array_equal(y3, jnp.reshape(x3, (131, 2))))

    print("KERNEL_OK")
</pallas_src>

<mosaic_0001>
module attributes {stable_mosaic.version = 11 : i64} {
  func.func @_copy_kernel(%arg0: i32, %arg1: memref<16x128xf32, #tpu.memory_space<vmem>>, %arg2: memref<16x128xf32, #tpu.memory_space<vmem>>) attributes {dimension_semantics = [#tpu.dimension_semantics<parallel>], iteration_bounds = array<i64: 1>, scalar_prefetch = 0 : i64, scratch_operands = 0 : i64, tpu.core_type = #tpu.core_type<tc>, window_params = [{transform_indices = @transform_0, window_bounds = array<i64: 16, 128>}, {transform_indices = @transform_1, window_bounds = array<i64: 16, 128>}]} {
    %c0 = arith.constant 0 : index
    %c0_0 = arith.constant 0 : index
    %0 = vector.load %arg1[%c0, %c0_0] : memref<16x128xf32, #tpu.memory_space<vmem>>, vector<16x128xf32>
    %c0_1 = arith.constant 0 : index
    %c0_2 = arith.constant 0 : index
    %1 = vector.load %arg2[%c0_1, %c0_2] : memref<16x128xf32, #tpu.memory_space<vmem>>, vector<16x128xf32>
    tpu.vector_store %arg2[%c0_1, %c0_2], %0 {strides = array<i32>} : memref<16x128xf32, #tpu.memory_space<vmem>>, vector<16x128xf32>,
    return
  }
  func.func @transform_0(%arg0: i32) -> (i32, i32) {
    %c0_i32 = arith.constant 0 : i32
    %c0_i32_0 = arith.constant 0 : i32
    return %arg0, %c0_i32 : i32, i32
  }
  func.func @transform_1(%arg0: i32) -> (i32, i32) {
    %c0_i32 = arith.constant 0 : i32
    %c0_i32_0 = arith.constant 0 : i32
    return %arg0, %c0_i32 : i32, i32
  }
}

</mosaic_0001>

<llo_original>
// kernel: tpu_custom_call.1
$region0: #{tpu_custom_call.1}
  #allocation0 [shape = 'u32[]', space=smem, size = 0x4, offset = 0x4, fixed_abs, tag = 'smem constant byte address 0x4 - core index']
  #allocation1 [shape = 'u32[144,128]{1,0:T(1,128)}', space=vmem, size = 0x12000, scoped, tag = 'internal scratch']
  %s0 = inlined_call_operand.hbm [shape: f32[16,128], index: 0, kind: input, shape index: {}, may-alias: {0,1}]
  %s1 = inlined_call_operand.hbm [shape: f32[16,128], index: 1, kind: output, shape index: {}, may-alias: {0,1}]
  %s2 = sld [smem:[#allocation0]]
  $region18: #{tpu_custom_call.1} parent=0
    _
  %s4 = ssub.s32 1, %s2
  %s5 = scalar_select 0, %s4, %s2
  $region1: #{tpu_custom_call.1} parent=0
    #allocation2 [shape = 'u8[8192]{0}', space=vmem, size = 0x2000, scoped, tag = 'input window, operand 0, single buffered']
    #allocation3 [shape = 's32[1]{0}', space=sflag, size = 0x4, scoped, tag = 'scoped memory for tpu_custom_call.1']
    #allocation4 [shape = 's32[1]{0}', space=sflag, size = 0x4, scoped, tag = 'scoped memory for tpu_custom_call.1']
    #allocation5 [shape = 'u8[8192]{0}', space=vmem, size = 0x2000, scoped, tag = 'output window, operand 0, single buffered']
    %6 = vsyncpa [#allocation3], 0
    %7 = vsyncpa [#allocation4], 0
    // Predicated region
    $region2: #{tpu_custom_call.1} parent=1 // pred_check
      _
    $region3: #{tpu_custom_call.1} parent=1 // pred_check_branch
      %9 = sbr.rel (0) target = $region5
    $region4: #{tpu_custom_call.1} parent=1 // pred_region
      %s11 = ssub.s32 256, 256
      %12 = vsyncadd [#allocation3], %s11
      %s13 = sshll.u32 [#allocation2], 4
      %s14 = int_to_ptr.vmem [resolvable:$true] %s13
      %19 = dma.hbm_to_vmem [thread:$0]  %s0, 256, %s14, [#allocation3], 128, 128, 8
    $region5: #{tpu_custom_call.1} parent=1 // pred_fallthru
      _
    // Predicated region
    $region6: #{tpu_custom_call.1} parent=1 // pred_check
      _
    $region7: #{tpu_custom_call.1} parent=1 // pred_check_branch
      %21 = sbr.rel (0) target = $region9
    $region8: #{tpu_custom_call.1} parent=1 // pred_region
      %22 = dma.done [#allocation3], 256
    $region9: #{tpu_custom_call.1} parent=1 // pred_fallthru
      _
    %v23 = vld [vmem:[#allocation2] sm:$0xff]
    %v24 = vld [vmem:[#allocation2 + $0x8] sm:$0xff]
    %25 = vst [vmem:[#allocation5] sm:$0xff] %v23
    %26 = vst [vmem:[#allocation5 + $0x8] sm:$0xff] %v24
    // Predicated region
    $region10: #{tpu_custom_call.1} parent=1 // pred_check
      _
    $region11: #{tpu_custom_call.1} parent=1 // pred_check_branch
      %28 = sbr.rel (0) target = $region13
    $region12: #{tpu_custom_call.1} parent=1 // pred_region
      %s30 = ssub.s32 256, 256
      %31 = vsyncadd [#allocation4], %s30
      %s32 = sshll.u32 [#allocation5], 4
      %s33 = int_to_ptr.vmem [resolvable:$true] %s32
      %38 = dma.vmem_to_hbm [thread:$0]  %s33, 256, %s1, [#allocation4], 128, 128, 8
    $region13: #{tpu_custom_call.1} parent=1 // pred_fallthru
      _
    // Predicated region
    $region14: #{tpu_custom_call.1} parent=1 // pred_check
      _
    $region15: #{tpu_custom_call.1} parent=1 // pred_check_branch
      %40 = sbr.rel (0) target = $region17
    $region16: #{tpu_custom_call.1} parent=1 // pred_region
      %41 = dma.done [#allocation4], 256
    $region17: #{tpu_custom_call.1} parent=1 // pred_fallthru
      _
    %42 = vsyncpa [#allocation3], 1
    %43 = vsyncpa [#allocation4], 1

</llo_original>
